<compile_context>
chip_gen: v5e
topology: v5e:2x2
jax: 0.10.0
libtpu: 0.0.40
codegen_flags: <defaults>
</compile_context>

<pallas_src>
import math
from functools import partial

import jax
import jax.numpy as jnp
from jax import lax
from jax.experimental import pallas as pl
from jax.experimental.pallas import tpu as pltpu


ACT_DT = jnp.bfloat16          # activation / weight storage dtype (MXU path)
_VMEM_LIMIT = 32 * 1024 * 1024  # explicit scoped-VMEM limit (safe on v5e/v6e/v7x)


def _ru(x, m):
    return (x + m - 1) // m * m


# ----------------------- in-kernel elementwise helpers ----------------------

def _erf_approx(x):
    # Abramowitz & Stegun 7.1.26, |error| < 1.5e-7 (uses only exp/mul/add).
    a1, a2, a3, a4, a5 = 0.254829592, -0.284496736, 1.421413741, -1.453152027, 1.061405429
    pconst = 0.3275911
    s = jnp.where(x >= 0.0, 1.0, -1.0)
    z = jnp.abs(x)
    t = 1.0 / (1.0 + pconst * z)
    poly = ((((a5 * t + a4) * t + a3) * t + a2) * t + a1) * t
    return s * (1.0 - poly * jnp.exp(-z * z))


def _gelu(x):
    # exact-erf GELU via high-accuracy erf approximation (fused in-kernel)
    return 0.5 * x * (1.0 + _erf_approx(x * 0.7071067811865476))


def _sigmoid(x):
    return 1.0 / (1.0 + jnp.exp(-x))


def _apply_act(y, activation):
    if activation is None:
        return y
    if activation == "gelu":
        return _gelu(y)
    if activation == "relu":
        return jnp.maximum(y, 0.0)
    if activation == "sigmoid":
        return _sigmoid(y)
    if activation == "silu":
        return y * _sigmoid(y)
    raise ValueError(activation)


# ------------------------- tiled linear (1x1 conv) --------------------------

def _linear_kernel(a_ref, b_ref, bias_ref, o_ref, acc_ref, *, activation):
    @pl.when(pl.program_id(2) == 0)
    def _():
        acc_ref[...] = jnp.zeros_like(acc_ref)

    acc_ref[...] += jnp.dot(a_ref[...], b_ref[...],
                            preferred_element_type=jnp.float32)

    @pl.when(pl.program_id(2) == pl.num_programs(2) - 1)
    def _():
        y = acc_ref[...] + bias_ref[...].astype(jnp.float32)
        y = _apply_act(y, activation)
        o_ref[...] = y.astype(o_ref.dtype)


def pallas_linear(a, w, bias=None, activation=None, out_dtype=None):
    """a: (M, K), w: (K, N), bias: (N,) or None -> (M, N).

    Tiled matmul with f32 accumulation and a fused bias+activation epilogue.
    """
    M, K = a.shape
    Kw, N = w.shape
    assert K == Kw
    out_dtype = out_dtype if out_dtype is not None else a.dtype
    if bias is None:
        bias = jnp.zeros((N,), jnp.float32)
    bias2 = bias.astype(jnp.float32).reshape(1, N)

    # Tile selection: full-dim blocks for small dims (always legal), 256/512
    # tiles (MXU / lane aligned) for big dims; padded arrays for divisibility.
    if M > 256:
        tm, Mp = 256, _ru(M, 256)
    else:
        tm, Mp = M, M
    if N > 256:
        tn, Np = 256, _ru(N, 256)
    else:
        tn, Np = N, N
    if K > 1024:
        tk, Kp = 512, _ru(K, 512)
    else:
        tk, Kp = K, K

    a_p = a if (Mp == M and Kp == K) else jnp.pad(a, ((0, Mp - M), (0, Kp - K)))
    w_p = w if (Kp == K and Np == N) else jnp.pad(w, ((0, Kp - K), (0, Np - N)))
    b_p = bias2 if Np == N else jnp.pad(bias2, ((0, 0), (0, Np - N)))

    grid = (Mp // tm, Np // tn, Kp // tk)
    out = pl.pallas_call(
        partial(_linear_kernel, activation=activation),
        grid=grid,
        in_specs=[
            pl.BlockSpec((tm, tk), lambda i, j, k: (i, k)),
            pl.BlockSpec((tk, tn), lambda i, j, k: (k, j)),
            pl.BlockSpec((1, tn), lambda i, j, k: (0, j)),
        ],
        out_specs=pl.BlockSpec((tm, tn), lambda i, j, k: (i, j)),
        out_shape=jax.ShapeDtypeStruct((Mp, Np), out_dtype),
        scratch_shapes=[pltpu.VMEM((tm, tn), jnp.float32)],
        compiler_params=pltpu.CompilerParams(
            dimension_semantics=("parallel", "parallel", "arbitrary"),
            vmem_limit_bytes=_VMEM_LIMIT),
    )(a_p, w_p, b_p)

    if Mp != M or Np != N:
        out = out[:M, :N]
    return out


# ------------------- depthwise 3x3 conv (halo tile in VMEM) -----------------

def _dwconv_kernel(ph_ref, w_ref, b_ref, o_ref, s_ref, *, offs, Ho, Wo):
    C = o_ref.shape[-1]
    w = w_ref[...].astype(jnp.float32)                       # (9, C)
    bias = b_ref[...].astype(jnp.float32).reshape(1, 1, C)
    acc = None
    for k, (p, oi, oj) in enumerate(offs):
        tap = ph_ref[0, p, oi:oi + Ho, oj:oj + Wo, :].astype(jnp.float32)
        term = tap * w[k].reshape(1, 1, C)
        acc = term if acc is None else acc + term
    act = _gelu(acc + bias)                                  # fused BN-bias + GELU
    o_ref[...] = act.reshape(1, Ho, Wo, C).astype(o_ref.dtype)
    # spatial sum side-output -> SE gate mean needs no extra HBM pass
    s_ref[...] = jnp.sum(act, axis=(0, 1)).reshape(1, 1, C)


def pallas_dwconv(h, w_taps, bias, stride):
    """Depthwise 3x3, pad=1, given stride; fused BN bias + GELU.

    h: (b, H, W, C); w_taps: (9, C); bias: (C,)
    returns (out (b, Ho, Wo, C), spatial_sum (b, 1, C) float32)
    """
    b, H, W, C = h.shape
    Ho = (H + 2 - 3) // stride + 1
    Wo = (W + 2 - 3) // stride + 1
    xp = jnp.pad(h, ((0, 0), (1, 1), (1, 1), (0, 0)))
    if stride == 1:
        phases = xp[:, None]                                  # (b, 1, H+2, W+2, C)
        offs = tuple((0, ki, kj) for ki in range(3) for kj in range(3))
    else:
        # 2x2 phase decomposition so all in-kernel slices stay contiguous.
        Hp, Wp = H + 2, W + 2
        assert Hp % 2 == 0 and Wp % 2 == 0, "even spatial dims expected"
        phases = xp.reshape(b, Hp // 2, 2, Wp // 2, 2, C)
        phases = phases.transpose(0, 2, 4, 1, 3, 5).reshape(b, 4, Hp // 2, Wp // 2, C)
        offs = tuple((2 * (ki % 2) + (kj % 2), ki // 2, kj // 2)
                     for ki in range(3) for kj in range(3))

    P, Hin, Win = phases.shape[1], phases.shape[2], phases.shape[3]
    out, ssum = pl.pallas_call(
        partial(_dwconv_kernel, offs=offs, Ho=Ho, Wo=Wo),
        grid=(b,),
        in_specs=[
            pl.BlockSpec((1, P, Hin, Win, C), lambda i: (i, 0, 0, 0, 0)),
            pl.BlockSpec((9, C), lambda i: (0, 0)),
            pl.BlockSpec((1, C), lambda i: (0, 0)),
        ],
        out_specs=[
            pl.BlockSpec((1, Ho, Wo, C), lambda i: (i, 0, 0, 0)),
            pl.BlockSpec((1, 1, C), lambda i: (i, 0, 0)),
        ],
        out_shape=[
            jax.ShapeDtypeStruct((b, Ho, Wo, C), h.dtype),
            jax.ShapeDtypeStruct((b, 1, C), jnp.float32),
        ],
        compiler_params=pltpu.CompilerParams(
            dimension_semantics=("parallel",),
            vmem_limit_bytes=_VMEM_LIMIT),
    )(phases, w_taps.astype(jnp.float32), bias.astype(jnp.float32).reshape(1, C))
    return out, ssum


# -------------------- fused attention block (per window-block) --------------

def _attention_kernel(seq_ref, gam_ref, bet_ref, wqkv_ref, qg_ref, kg_ref,
                      bias_ref, wout_ref, o_ref, *, heads, dim_head, wb, n, dim):
    cdt = o_ref.dtype                                        # MXU compute dtype
    x = seq_ref[...].astype(jnp.float32)                     # (WB, N, dim)

    # LayerNorm (no affine, eps=1e-5)
    mu = jnp.mean(x, axis=-1, keepdims=True)
    xc = x - mu
    var = jnp.mean(xc * xc, axis=-1, keepdims=True)
    xn = xc * lax.rsqrt(var + 1e-5)

    # FiLM conditioning (per-window gamma / beta)
    xm = xn * gam_ref[...].astype(jnp.float32) + bet_ref[...].astype(jnp.float32)

    # fused qkv projection, lane-dense (WB*N, 3*H*D)
    xm2 = xm.reshape(wb * n, dim).astype(cdt)
    qkv = jnp.dot(xm2, wqkv_ref[...], preferred_element_type=jnp.float32)

    hd = heads * dim_head
    scale = float(dim_head) ** 0.5
    outs = []
    for h in range(heads):
        q = qkv[:, h * dim_head:(h + 1) * dim_head].reshape(wb, n, dim_head)
        k = qkv[:, hd + h * dim_head:hd + (h + 1) * dim_head].reshape(wb, n, dim_head)
        v = qkv[:, 2 * hd + h * dim_head:2 * hd + (h + 1) * dim_head].reshape(wb, n, dim_head)

        # RMSNorm == F.normalize(x) * sqrt(D) * gamma  (clamp at 1e-12)
        qn = q * lax.rsqrt(jnp.maximum(jnp.sum(q * q, -1, keepdims=True), 1e-24))
        kn = k * lax.rsqrt(jnp.maximum(jnp.sum(k * k, -1, keepdims=True), 1e-24))
        qn = (qn * (scale * qg_ref[h].reshape(1, 1, dim_head).astype(jnp.float32))).astype(cdt)
        kn = (kn * (scale * kg_ref[h].reshape(1, 1, dim_head).astype(jnp.float32))).astype(cdt)

        sim = lax.dot_general(qn, kn, (((2,), (2,)), ((0,), (0,))),
                              preferred_element_type=jnp.float32)        # (WB, N, N)
        sim = sim + bias_ref[h].astype(jnp.float32)[None]

        m = jnp.max(sim, axis=-1, keepdims=True)
        p = jnp.exp(sim - m)
        attn = p * pl.reciprocal(jnp.sum(p, axis=-1, keepdims=True), approx=True)

        o_h = lax.dot_general(attn.astype(cdt), v.astype(cdt),
                              (((2,), (1,)), ((0,), (0,))),
                              preferred_element_type=jnp.float32)        # (WB, N, D)
        outs.append(o_h)

    omerge = jnp.concatenate(outs, axis=-1).reshape(wb * n, hd).astype(cdt)
    proj = jnp.dot(omerge, wout_ref[...], preferred_element_type=jnp.float32)
    # fused residual add
    o_ref[...] = (proj.reshape(wb, n, dim) + x).astype(o_ref.dtype)


def _pick_window_block(bw, cap=16):
    for d in range(min(cap, bw), 0, -1):
        if bw % d == 0:
            return d
    return 1


def pallas_attention_block(seq, gamma, beta, wqkv, qg, kg, bias, wout):
    """Fully fused attention block (LN + FiLM + attn + out proj + residual).

    seq: (BW, N, dim); gamma/beta: (BW, 1, dim); wqkv: (dim, 3HD);
    qg/kg: (H, 1, D); bias: (H, N, N); wout: (HD, dim).
    """
    BW, N, dim = seq.shape
    H, _, D = qg.shape
    HD = H * D
    WB = _pick_window_block(BW)

    kern = partial(_attention_kernel, heads=H, dim_head=D, wb=WB, n=N, dim=dim)
    return pl.pallas_call(
        kern,
        grid=(BW // WB,),
        in_specs=[
            pl.BlockSpec((WB, N, dim), lambda i: (i, 0, 0)),
            pl.BlockSpec((WB, 1, dim), lambda i: (i, 0, 0)),
            pl.BlockSpec((WB, 1, dim), lambda i: (i, 0, 0)),
            pl.BlockSpec((dim, 3 * HD), lambda i: (0, 0)),
            pl.BlockSpec((H, 1, D), lambda i: (0, 0, 0)),
            pl.BlockSpec((H, 1, D), lambda i: (0, 0, 0)),
            pl.BlockSpec((H, N, N), lambda i: (0, 0, 0)),
            pl.BlockSpec((HD, dim), lambda i: (0, 0)),
        ],
        out_specs=pl.BlockSpec((WB, N, dim), lambda i: (i, 0, 0)),
        out_shape=jax.ShapeDtypeStruct((BW, N, dim), seq.dtype),
        compiler_params=pltpu.CompilerParams(
            dimension_semantics=("parallel",),
            vmem_limit_bytes=_VMEM_LIMIT),
    )(seq, gamma, beta, wqkv, qg, kg, bias, wout)


# ----------------------------- module pieces -------------------------------

def mbconv_forward(x, p):
    """MBConv (eval mode, BN folded). x: (b, H, W, Cin) NHWC, bf16."""
    b, H, W, Cin = x.shape
    eps = 1e-5
    stride = 2 if p["downsample"] else 1

    # --- 1x1 conv + BN1 (folded) + GELU (fused epilogue) ---
    s1 = p["bn1_w"] / jnp.sqrt(p["bn1_rv"] + eps)
    w1 = p["conv1_w"][:, :, 0, 0]                              # (hidden, Cin)
    hidden = w1.shape[0]
    w1f = (w1 * s1[:, None]).T.astype(ACT_DT)                  # (Cin, hidden)
    b1f = (p["conv1_b"] - p["bn1_rm"]) * s1 + p["bn1_b"]
    h = pallas_linear(x.reshape(b * H * W, Cin), w1f, b1f, activation="gelu")
    h = h.reshape(b, H, W, hidden)

    # --- depthwise 3x3 + BN2 (folded) + GELU, with spatial-sum side output ---
    s2 = p["bn2_w"] / jnp.sqrt(p["bn2_rv"] + eps)
    w_taps = (p["dw_w"][:, 0].reshape(hidden, 9) * s2[:, None]).T   # (9, hidden)
    dwb = (p["dw_b"] - p["bn2_rm"]) * s2 + p["bn2_b"]
    h2, ssum = pallas_dwconv(h, w_taps, dwb, stride)
    Ho, Wo = h2.shape[1], h2.shape[2]

    # --- Squeeze-Excitation (mean comes from the dwconv kernel) ---
    m = ssum.reshape(b, hidden) / float(Ho * Wo)               # (b, hidden) f32
    z = pallas_linear(m, p["se_w1"].T.astype(jnp.float32), activation="relu")
    gate = pallas_linear(z, p["se_w2"].T.astype(jnp.float32), activation="sigmoid")
    h2 = h2 * gate.astype(h2.dtype)[:, None, None, :]

    # --- 1x1 conv + BN3 (folded) ---
    s3 = p["bn3_w"] / jnp.sqrt(p["bn3_rv"] + eps)
    w2f = (p["conv2_w"][:, :, 0, 0] * s3[:, None]).T.astype(ACT_DT)
    b2f = (p["conv2_b"] - p["bn3_rm"]) * s3 + p["bn3_b"]
    out = pallas_linear(h2.reshape(b * Ho * Wo, hidden), w2f, b2f)
    out = out.reshape(b, Ho, Wo, w2f.shape[1])

    if (not p["downsample"]) and p["dim_in"] == p["dim_out"]:
        out = out + x          # MBConvResidual (Dropsample identity in eval)
    return out


def rel_pos_index_table(window_size, num_registers):
    w = window_size
    pos = jnp.arange(w)
    gi, gj = jnp.meshgrid(pos, pos, indexing="ij")
    grid = jnp.stack([gi, gj], axis=-1).reshape(w * w, 2)
    rel = grid[:, None, :] - grid[None, :, :] + (w - 1)
    idx = rel[..., 0] * (2 * w - 1) + rel[..., 1]
    num_rel = (2 * w - 1) ** 2
    idx = jnp.pad(idx, ((num_registers, 0), (num_registers, 0)),
                  constant_values=num_rel)
    return idx                                                  # (N, N)


def attention_forward(x_seq, cond, p, bias_hnn, heads, dim_head, windows_per_batch):
    """Attention with FiLM conditioning; returns attn(x) + x (residual fused)."""
    BW, N, dim = x_seq.shape
    # FiLM MLP on cond (tiny) -> per-batch gamma/beta, repeated per window
    h1 = pallas_linear(cond, p["film_w1"].T, p["film_b1"], activation="silu")
    h2 = pallas_linear(h1, p["film_w2"].T, p["film_b2"])        # (b, 2*dim)
    gb = h2.reshape(h2.shape[0], 2, dim)
    gamma = jnp.repeat(gb[:, 0], windows_per_batch, axis=0).reshape(BW, 1, dim)
    beta = jnp.repeat(gb[:, 1], windows_per_batch, axis=0).reshape(BW, 1, dim)

    return pallas_attention_block(
        x_seq,
        gamma.astype(x_seq.dtype), beta.astype(x_seq.dtype),
        p["wqkv"].T.astype(x_seq.dtype),
        p["q_gamma"], p["k_gamma"],
        bias_hnn,
        p["wout"].T.astype(x_seq.dtype))


def maxvit_forward(x_nchw, cond, layers, cfg):
    w = cfg["window_size"]
    heads, dim_head = cfg["heads"], cfg["dim_head"]
    n_reg = cfg["num_register_tokens"]
    idx = rel_pos_index_table(w, n_reg)

    x = jnp.transpose(x_nchw, (0, 2, 3, 1)).astype(ACT_DT)      # NCHW -> NHWC
    b = x.shape[0]
    for layer in layers:
        x = mbconv_forward(x, layer["mbconv"])
        _, H, W, d = x.shape
        nx, ny = H // w, W // w

        # ------------------ block (window) attention ------------------
        x6 = x.reshape(b, nx, w, ny, w, d).transpose(0, 1, 3, 2, 4, 5)
        r = jnp.broadcast_to(layer["register_tokens"].astype(x.dtype)[None, None, None],
                             (b, nx, ny, n_reg, d))
        r_seq = r.reshape(b * nx * ny, n_reg, d)
        x_seq = x6.reshape(b * nx * ny, w * w, d)
        seq = jnp.concatenate([r_seq, x_seq], axis=1)
        bias = jnp.transpose(layer["block_attn"]["rel_pos_emb"][idx], (2, 0, 1))
        seq = attention_forward(seq, cond, layer["block_attn"], bias,
                                heads, dim_head, nx * ny)       # residual fused
        r_seq, x_seq = seq[:, :n_reg], seq[:, n_reg:]
        x6 = x_seq.reshape(b, nx, ny, w, w, d).transpose(0, 1, 3, 2, 4, 5)
        x = x6.reshape(b, H, W, d)
        r = r_seq.reshape(b, nx, ny, n_reg, d)

        # ------------------ grid attention ------------------
        x6 = x.reshape(b, w, nx, w, ny, d).transpose(0, 2, 4, 1, 3, 5)
        r = jnp.mean(r.astype(jnp.float32), axis=(1, 2)).astype(x.dtype)
        r = jnp.broadcast_to(r[:, None, None], (b, nx, ny, n_reg, d))
        r_seq = r.reshape(b * nx * ny, n_reg, d)
        x_seq = x6.reshape(b * nx * ny, w * w, d)
        seq = jnp.concatenate([r_seq, x_seq], axis=1)
        bias = jnp.transpose(layer["grid_attn"]["rel_pos_emb"][idx], (2, 0, 1))
        seq = attention_forward(seq, cond, layer["grid_attn"], bias,
                                heads, dim_head, nx * ny)       # residual fused
        x_seq = seq[:, n_reg:]
        x6 = x_seq.reshape(b, nx, ny, w, w, d).transpose(0, 3, 1, 4, 2, 5)
        x = x6.reshape(b, H, W, d)

    return jnp.transpose(x, (0, 3, 1, 2)).astype(jnp.float32)   # NHWC -> NCHW


# ----------------------------- parameter init -------------------------------

def init_maxvit_params(key, cfg):
    depth = cfg["depth"]
    depth = (depth,) if isinstance(depth, int) else tuple(depth)
    num_stages = len(depth)
    dims = tuple(2 ** i * cfg["dim"] for i in range(num_stages))
    dim_pairs = tuple(zip(dims[:-1], dims[1:]))
    heads, dim_head = cfg["heads"], cfg["dim_head"]
    cond_dim, window_size = cfg["cond_dim"], cfg["window_size"]
    n_reg = cfg["num_register_tokens"]

    keys = iter(jax.random.split(key, 4096))

    def nrm(shape, scale=0.1):
        return scale * jax.random.normal(next(keys), shape, jnp.float32)

    layers = []
    for (layer_dim_in, layer_dim), layer_depth in zip(dim_pairs, depth):
        for stage_ind in range(layer_depth):
            is_first = stage_ind == 0
            stage_dim_in = layer_dim_in if is_first else layer_dim
            hidden = int(cfg["mbconv_expansion_rate"] * layer_dim)
            se_hidden = int(hidden * cfg["mbconv_shrinkage_rate"])
            mb = dict(
                conv1_w=nrm((hidden, stage_dim_in, 1, 1)), conv1_b=nrm((hidden,)),
                bn1_w=1.0 + nrm((hidden,)), bn1_b=nrm((hidden,)),
                bn1_rm=nrm((hidden,)), bn1_rv=jnp.abs(nrm((hidden,))) + 1.0,
                dw_w=nrm((hidden, 1, 3, 3)), dw_b=nrm((hidden,)),
                bn2_w=1.0 + nrm((hidden,)), bn2_b=nrm((hidden,)),
                bn2_rm=nrm((hidden,)), bn2_rv=jnp.abs(nrm((hidden,))) + 1.0,
                se_w1=nrm((se_hidden, hidden)), se_w2=nrm((hidden, se_hidden)),
                conv2_w=nrm((layer_dim, hidden, 1, 1)), conv2_b=nrm((layer_dim,)),
                bn3_w=1.0 + nrm((layer_dim,)), bn3_b=nrm((layer_dim,)),
                bn3_rm=nrm((layer_dim,)), bn3_rv=jnp.abs(nrm((layer_dim,))) + 1.0,
                downsample=is_first, dim_in=stage_dim_in, dim_out=layer_dim,
            )

            def make_attn():
                dim_inner = heads * dim_head
                return dict(
                    film_w1=nrm((layer_dim * 2, cond_dim)),
                    film_b1=nrm((layer_dim * 2,)),
                    film_w2=nrm((layer_dim * 2, layer_dim * 2)),
                    film_b2=nrm((layer_dim * 2,)),
                    wqkv=nrm((dim_inner * 3, layer_dim)),
                    q_gamma=jnp.ones((heads, 1, dim_head), jnp.float32),
                    k_gamma=jnp.ones((heads, 1, dim_head), jnp.float32),
                    wout=nrm((layer_dim, dim_inner)),
                    rel_pos_emb=nrm(((2 * window_size - 1) ** 2 + 1, heads),
                                    scale=0.02),
                )

            layers.append(dict(
                mbconv=mb,
                block_attn=make_attn(),
                grid_attn=make_attn(),
                register_tokens=nrm((n_reg, layer_dim), scale=1.0),
            ))
    return layers


# --------------------------------- main --------------------------------------

if __name__ == "__main__":
    cfg = dict(
        dim=8, depth=(1, 1), cond_dim=8, heads=2, dim_head=8, window_size=4,
        mbconv_expansion_rate=2, mbconv_shrinkage_rate=0.25,
        num_register_tokens=4,
    )
    key = jax.random.PRNGKey(0)
    kp, kx, kc = jax.random.split(key, 3)
    layers = init_maxvit_params(kp, cfg)

    # x: NCHW (batch=2, channels=dim=8, spatial=8x8); cond: (batch, cond_dim)
    x = jax.random.normal(kx, (2, 8, 8, 8), jnp.float32)
    cond = jax.random.normal(kc, (2, 8), jnp.float32)

    out = maxvit_forward(x, cond, layers, cfg)
    out = jax.block_until_ready(out)

    assert out.shape == (2, 16, 4, 4), out.shape
    assert bool(jnp.all(jnp.isfinite(out)))
    print("KERNEL_OK")
</pallas_src>

<mosaic_0001>
module attributes {stable_mosaic.version = 11 : i64} {
  func.func @_linear_kernel(%arg0: i32, %arg1: i32, %arg2: i32, %arg3: memref<128x8xbf16, #tpu.memory_space<vmem>>, %arg4: memref<8x32xbf16, #tpu.memory_space<vmem>>, %arg5: memref<1x32xf32, #tpu.memory_space<vmem>>, %arg6: memref<128x32xbf16, #tpu.memory_space<vmem>>, %arg7: memref<128x32xf32, #tpu.memory_space<vmem>>) attributes {dimension_semantics = [#tpu.dimension_semantics<parallel>, #tpu.dimension_semantics<parallel>, #tpu.dimension_semantics<arbitrary>], iteration_bounds = array<i64: 1, 1, 1>, scalar_prefetch = 0 : i64, scratch_operands = 1 : i64, tpu.core_type = #tpu.core_type<tc>, window_params = [{transform_indices = @transform_0, window_bounds = array<i64: 128, 8>}, {transform_indices = @transform_1, window_bounds = array<i64: 8, 32>}, {transform_indices = @transform_2, window_bounds = array<i64: 1, 32>}, {transform_indices = @transform_3, window_bounds = array<i64: 128, 32>}]} {
    %c0_i32 = arith.constant 0 : i32
    %0 = arith.cmpi eq, %arg2, %c0_i32 : i32
    %1 = arith.extui %0 : i1 to i32
    %c0_i32_0 = arith.constant 0 : i32
    %2 = arith.cmpi ne, %1, %c0_i32_0 : i32
    scf.if %2 {
      %cst_10 = arith.constant 0.000000e+00 : f32
      %12 = vector.broadcast %cst_10 : f32 to vector<128x32xf32>
      %c0_11 = arith.constant 0 : index
      %c0_12 = arith.constant 0 : index
      %13 = vector.load %arg7[%c0_11, %c0_12] : memref<128x32xf32, #tpu.memory_space<vmem>>, vector<128x32xf32>
      tpu.vector_store %arg7[%c0_11, %c0_12], %12 {strides = array<i32>} : memref<128x32xf32, #tpu.memory_space<vmem>>, vector<128x32xf32>,
    } else {
    }
    %c0 = arith.constant 0 : index
    %c0_1 = arith.constant 0 : index
    %3 = vector.load %arg7[%c0, %c0_1] : memref<128x32xf32, #tpu.memory_space<vmem>>, vector<128x32xf32>
    %c0_2 = arith.constant 0 : index
    %c0_3 = arith.constant 0 : index
    %4 = vector.load %arg3[%c0_2, %c0_3] : memref<128x8xbf16, #tpu.memory_space<vmem>>, vector<128x8xbf16>
    %c0_4 = arith.constant 0 : index
    %c0_5 = arith.constant 0 : index
    %5 = vector.load %arg4[%c0_4, %c0_5] : memref<8x32xbf16, #tpu.memory_space<vmem>>, vector<8x32xbf16>
    %cst = arith.constant dense<0.000000e+00> : vector<128x32xf32>
    %6 = tpu.matmul %4, %5, %cst {dimension_numbers = #tpu.dot_dimension_numbers<[1], [0], [0], [1], [0, 0, 1, 1], [], []>} : vector<128x8xbf16>, vector<8x32xbf16>, vector<128x32xf32> -> vector<128x32xf32>
    %7 = arith.addf %3, %6 : vector<128x32xf32>
    %c0_6 = arith.constant 0 : index
    %c0_7 = arith.constant 0 : index
    %8 = vector.load %arg7[%c0_6, %c0_7] : memref<128x32xf32, #tpu.memory_space<vmem>>, vector<128x32xf32>
    tpu.vector_store %arg7[%c0_6, %c0_7], %7 {strides = array<i32>} : memref<128x32xf32, #tpu.memory_space<vmem>>, vector<128x32xf32>,
    %c0_i32_8 = arith.constant 0 : i32
    %9 = arith.cmpi eq, %arg2, %c0_i32_8 : i32
    %10 = arith.extui %9 : i1 to i32
    %c0_i32_9 = arith.constant 0 : i32
    %11 = arith.cmpi ne, %10, %c0_i32_9 : i32
    scf.if %11 {
      %c0_10 = arith.constant 0 : index
      %c0_11 = arith.constant 0 : index
      %12 = vector.load %arg7[%c0_10, %c0_11] : memref<128x32xf32, #tpu.memory_space<vmem>>, vector<128x32xf32>
      %c0_12 = arith.constant 0 : index
      %c0_13 = arith.constant 0 : index
      %13 = vector.load %arg5[%c0_12, %c0_13] : memref<1x32xf32, #tpu.memory_space<vmem>>, vector<1x32xf32>
      %14 = vector.broadcast %13 : vector<1x32xf32> to vector<128x32xf32>
      %15 = arith.addf %12, %14 : vector<128x32xf32>
      %cst_14 = arith.constant 5.000000e-01 : f32
      %16 = vector.broadcast %cst_14 : f32 to vector<128x32xf32>
      %17 = arith.mulf %16, %15 : vector<128x32xf32>
      %cst_15 = arith.constant 0.707106769 : f32
      %18 = vector.broadcast %cst_15 : f32 to vector<128x32xf32>
      %19 = arith.mulf %15, %18 : vector<128x32xf32>
      %cst_16 = arith.constant 0.000000e+00 : f32
      %20 = vector.broadcast %cst_16 : f32 to vector<128x32xf32>
      %21 = arith.cmpf oge, %19, %20 : vector<128x32xf32>
      %cst_17 = arith.constant 1.000000e+00 : f32
      %cst_18 = arith.constant -1.000000e+00 : f32
      %22 = vector.broadcast %cst_17 : f32 to vector<128x32xf32>
      %23 = vector.broadcast %cst_18 : f32 to vector<128x32xf32>
      %24 = arith.select %21, %22, %23 : vector<128x32xi1>, vector<128x32xf32>
      %25 = math.absf %19 : vector<128x32xf32>
      %cst_19 = arith.constant 0.327591091 : f32
      %26 = vector.broadcast %cst_19 : f32 to vector<128x32xf32>
      %27 = arith.mulf %26, %25 : vector<128x32xf32>
      %cst_20 = arith.constant 1.000000e+00 : f32
      %28 = vector.broadcast %cst_20 : f32 to vector<128x32xf32>
      %29 = arith.addf %28, %27 : vector<128x32xf32>
      %cst_21 = arith.constant 1.000000e+00 : f32
      %30 = vector.broadcast %cst_21 : f32 to vector<128x32xf32>
      %31 = arith.divf %30, %29 : vector<128x32xf32>
      %cst_22 = arith.constant 1.06140542 : f32
      %32 = vector.broadcast %cst_22 : f32 to vector<128x32xf32>
      %33 = arith.mulf %32, %31 : vector<128x32xf32>
      %cst_23 = arith.constant -1.45315206 : f32
      %34 = vector.broadcast %cst_23 : f32 to vector<128x32xf32>
      %35 = arith.addf %33, %34 : vector<128x32xf32>
      %36 = arith.mulf %35, %31 : vector<128x32xf32>
      %cst_24 = arith.constant 1.42141378 : f32
      %37 = vector.broadcast %cst_24 : f32 to vector<128x32xf32>
      %38 = arith.addf %36, %37 : vector<128x32xf32>
      %39 = arith.mulf %38, %31 : vector<128x32xf32>
      %cst_25 = arith.constant -0.284496725 : f32
      %40 = vector.broadcast %cst_25 : f32 to vector<128x32xf32>
      %41 = arith.addf %39, %40 : vector<128x32xf32>
      %42 = arith.mulf %41, %31 : vector<128x32xf32>
      %cst_26 = arith.constant 0.254829586 : f32
      %43 = vector.broadcast %cst_26 : f32 to vector<128x32xf32>
      %44 = arith.addf %42, %43 : vector<128x32xf32>
      %45 = arith.mulf %44, %31 : vector<128x32xf32>
      %cst_27 = arith.constant 0.000000e+00 : f32
      %46 = vector.broadcast %cst_27 : f32 to vector<128x32xf32>
      %47 = arith.subf %46, %25 : vector<128x32xf32>
      %48 = arith.mulf %47, %25 : vector<128x32xf32>
      %49 = math.exp %48 : vector<128x32xf32>
      %50 = arith.mulf %45, %49 : vector<128x32xf32>
      %cst_28 = arith.constant 1.000000e+00 : f32
      %51 = vector.broadcast %cst_28 : f32 to vector<128x32xf32>
      %52 = arith.subf %51, %50 : vector<128x32xf32>
      %53 = arith.mulf %24, %52 : vector<128x32xf32>
      %cst_29 = arith.constant 1.000000e+00 : f32
      %54 = vector.broadcast %cst_29 : f32 to vector<128x32xf32>
      %55 = arith.addf %54, %53 : vector<128x32xf32>
      %56 = arith.mulf %17, %55 : vector<128x32xf32>
      %57 = arith.truncf %56 : vector<128x32xf32> to vector<128x32xbf16>
      %c0_30 = arith.constant 0 : index
      %c0_31 = arith.constant 0 : index
      %58 = vector.load %arg6[%c0_30, %c0_31] : memref<128x32xbf16, #tpu.memory_space<vmem>>, vector<128x32xbf16>
      tpu.vector_store %arg6[%c0_30, %c0_31], %57 {strides = array<i32>} : memref<128x32xbf16, #tpu.memory_space<vmem>>, vector<128x32xbf16>,
    } else {
    }
    return
  }
  func.func @transform_0(%arg0: i32, %arg1: i32, %arg2: i32) -> (i32, i32) {
    %c0_i32 = arith.constant 0 : i32
    return %arg0, %arg2 : i32, i32
  }
  func.func @transform_1(%arg0: i32, %arg1: i32, %arg2: i32) -> (i32, i32) {
    %c0_i32 = arith.constant 0 : i32
    return %arg2, %arg1 : i32, i32
  }
  func.func @transform_2(%arg0: i32, %arg1: i32, %arg2: i32) -> (i32, i32) {
    %c0_i32 = arith.constant 0 : i32
    %c0_i32_0 = arith.constant 0 : i32
    return %c0_i32, %arg1 : i32, i32
  }
  func.func @transform_3(%arg0: i32, %arg1: i32, %arg2: i32) -> (i32, i32) {
    %c0_i32 = arith.constant 0 : i32
    return %arg0, %arg1 : i32, i32
  }
}

</mosaic_0001>

<llo_original>
// kernel: tpu_custom_call.1
$region0: #{tpu_custom_call.1}
  #allocation0 [shape = 'u32[]', space=smem, size = 0x4, offset = 0x4, fixed_abs, tag = 'smem constant byte address 0x4 - core index']
  #allocation1 [shape = 'u32[72,128]{1,0:T(1,128)}', space=vmem, size = 0x9000, scoped, tag = 'internal scratch']
  #allocation2 [shape = 'f32[128,32]{1,0:T(8,128)}', space=vmem, size = 0x10000, scoped, tag = 'scratch operand']
  %s0 = inlined_call_operand.vmem [shape: bf16[128,8], index: 0, kind: input, shape index: {}]
  %s1 = inlined_call_operand.vmem [shape: bf16[8,32], index: 1, kind: input, shape index: {}]
  %s2 = inlined_call_operand.vmem [shape: f32[1,32], index: 2, kind: input, shape index: {}]
  %s3 = inlined_call_operand.vmem [shape: bf16[128,32], index: 3, kind: output, shape index: {}]
  %s4 = sld [smem:[#allocation0]]
  $region30: #{tpu_custom_call.1} parent=0
    _
  %s6 = ssub.s32 1, %s4
  %s7 = scalar_select 0, %s6, %s4
  // Predicated region
  $region2: #{tpu_custom_call.1} parent=0 // pred_check
    _
  $region3: #{tpu_custom_call.1} parent=0 // pred_check_branch
    %9 = sbr.rel (0) target = $region5
  $region4: #{tpu_custom_call.1} parent=0 // pred_region
    _
  $region5: #{tpu_custom_call.1} parent=0 // pred_fallthru
    _
  // Predicated region
  $region6: #{tpu_custom_call.1} parent=0 // pred_check
    _
  $region7: #{tpu_custom_call.1} parent=0 // pred_check_branch
    %11 = sbr.rel (0) target = $region9
  $region8: #{tpu_custom_call.1} parent=0 // pred_region
    _
  $region9: #{tpu_custom_call.1} parent=0 // pred_fallthru
    _
  // Predicated region
  $region10: #{tpu_custom_call.1} parent=0 // pred_check
    _
  $region11: #{tpu_custom_call.1} parent=0 // pred_check_branch
    %13 = sbr.rel (0) target = $region13
  $region12: #{tpu_custom_call.1} parent=0 // pred_region
    _
  $region13: #{tpu_custom_call.1} parent=0 // pred_fallthru
    _
  %p15 = scmp.eq.s32.totalorder 0, 0
  // Predicated region
  $region14: #{tpu_custom_call.1} parent=0 // pred_check
    %p16 = pneg %p15
  $region15: #{tpu_custom_call.1} parent=0 // pred_check_branch
    %18 = sbr.rel (%p16) target = $region17
  $region16: #{tpu_custom_call.1} parent=0 // pred_region
    %vm19 = vcmask 261120
    %20 = vst.msk [vmem:[#allocation2] sm:$0xff] %vm19, 0.0
    %21 = vst.msk [vmem:[#allocation2 + $0x8] sm:$0xff] %vm19, 0.0
    %22 = vst.msk [vmem:[#allocation2 + $0x10] sm:$0xff] %vm19, 0.0
    %23 = vst.msk [vmem:[#allocation2 + $0x18] sm:$0xff] %vm19, 0.0
    %24 = vst.msk [vmem:[#allocation2 + $0x20] sm:$0xff] %vm19, 0.0
    %25 = vst.msk [vmem:[#allocation2 + $0x28] sm:$0xff] %vm19, 0.0
    %26 = vst.msk [vmem:[#allocation2 + $0x30] sm:$0xff] %vm19, 0.0
    %27 = vst.msk [vmem:[#allocation2 + $0x38] sm:$0xff] %vm19, 0.0
    %28 = vst.msk [vmem:[#allocation2 + $0x40] sm:$0xff] %vm19, 0.0
    %29 = vst.msk [vmem:[#allocation2 + $0x48] sm:$0xff] %vm19, 0.0
    %30 = vst.msk [vmem:[#allocation2 + $0x50] sm:$0xff] %vm19, 0.0
    %31 = vst.msk [vmem:[#allocation2 + $0x58] sm:$0xff] %vm19, 0.0
    %32 = vst.msk [vmem:[#allocation2 + $0x60] sm:$0xff] %vm19, 0.0
    %33 = vst.msk [vmem:[#allocation2 + $0x68] sm:$0xff] %vm19, 0.0
    %34 = vst.msk [vmem:[#allocation2 + $0x70] sm:$0xff] %vm19, 0.0
    %35 = vst.msk [vmem:[#allocation2 + $0x78] sm:$0xff] %vm19, 0.0
  $region17: #{tpu_custom_call.1} parent=0 // pred_fallthru
    _
  %v36 = vld [vmem:[#allocation2] sm:$0xff]
  %v37 = vld [vmem:[#allocation2 + $0x8] sm:$0xff]
  %v38 = vld [vmem:[#allocation2 + $0x10] sm:$0xff]
  %v39 = vld [vmem:[#allocation2 + $0x18] sm:$0xff]
  %v40 = vld [vmem:[#allocation2 + $0x20] sm:$0xff]
  %v41 = vld [vmem:[#allocation2 + $0x28] sm:$0xff]
  %v42 = vld [vmem:[#allocation2 + $0x30] sm:$0xff]
  %v43 = vld [vmem:[#allocation2 + $0x38] sm:$0xff]
  %v44 = vld [vmem:[#allocation2 + $0x40] sm:$0xff]
  %v45 = vld [vmem:[#allocation2 + $0x48] sm:$0xff]
  %v46 = vld [vmem:[#allocation2 + $0x50] sm:$0xff]
  %v47 = vld [vmem:[#allocation2 + $0x58] sm:$0xff]
  %v48 = vld [vmem:[#allocation2 + $0x60] sm:$0xff]
  %v49 = vld [vmem:[#allocation2 + $0x68] sm:$0xff]
  %v50 = vld [vmem:[#allocation2 + $0x70] sm:$0xff]
  %v51 = vld [vmem:[#allocation2 + $0x78] sm:$0xff]
  %v52 = vld [vmem:[%s0] sm:$0xf]
  %v53 = vld [vmem:[%s0 + $0x4] sm:$0xf]
  %v54 = vld [vmem:[%s0 + $0x8] sm:$0xf]
  %v55 = vld [vmem:[%s0 + $0xc] sm:$0xf]
  %v56 = vld [vmem:[%s0 + $0x10] sm:$0xf]
  %v57 = vld [vmem:[%s0 + $0x14] sm:$0xf]
  %v58 = vld [vmem:[%s0 + $0x18] sm:$0xf]
  %v59 = vld [vmem:[%s0 + $0x1c] sm:$0xf]
  %v60 = vld [vmem:[%s0 + $0x20] sm:$0xf]
  %v61 = vld [vmem:[%s0 + $0x24] sm:$0xf]
  %v62 = vld [vmem:[%s0 + $0x28] sm:$0xf]
  %v63 = vld [vmem:[%s0 + $0x2c] sm:$0xf]
  %v64 = vld [vmem:[%s0 + $0x30] sm:$0xf]
  %v65 = vld [vmem:[%s0 + $0x34] sm:$0xf]
  %v66 = vld [vmem:[%s0 + $0x38] sm:$0xf]
  %v67 = vld [vmem:[%s0 + $0x3c] sm:$0xf]
  %v68 = vld [vmem:[%s1] sm:$0xf]
  %v85 = vunpack.c.l.b16 %v52
  %v86 = vunpack.c.l.b16 %v53
  %v87 = vunpack.c.l.b16 %v54
  %v88 = vunpack.c.l.b16 %v55
  %v89 = vunpack.c.l.b16 %v56
  %v90 = vunpack.c.l.b16 %v57
  %v91 = vunpack.c.l.b16 %v58
  %v92 = vunpack.c.l.b16 %v59
  %v93 = vunpack.c.l.b16 %v60
  %v94 = vunpack.c.l.b16 %v61
  %v95 = vunpack.c.l.b16 %v62
  %v96 = vunpack.c.l.b16 %v63
  %v97 = vunpack.c.l.b16 %v64
  %v98 = vunpack.c.l.b16 %v65
  %v99 = vunpack.c.l.b16 %v66
  %v100 = vunpack.c.l.b16 %v67
  %v101 = vpack.c.b16 %v86, %v85
  %v102 = vpack.c.b16 %v88, %v87
  %v103 = vpack.c.b16 %v90, %v89
  %v104 = vpack.c.b16 %v92, %v91
  %v105 = vpack.c.b16 %v94, %v93
  %v106 = vpack.c.b16 %v96, %v95
  %v107 = vpack.c.b16 %v98, %v97
  %v108 = vpack.c.b16 %v100, %v99
  %vm109 = vcmask 64512
  %v111 = vsel %vm109, %v101, 0
  %v114 = vsel %vm109, %v102, 0
  %v117 = vsel %vm109, %v103, 0
  %v120 = vsel %vm109, %v104, 0
  %v123 = vsel %vm109, %v105, 0
  %v126 = vsel %vm109, %v106, 0
  %v129 = vsel %vm109, %v107, 0
  %v132 = vsel %vm109, %v108, 0
  %vm134 = vcmask 1043456
  %v136 = vsel %vm134, %v68, 0
  %138 = vmatpush.bf16.msra.mxu0 0
  %139 = vmatpush.bf16.msra.mxu0 0
  %140 = vmatpush.bf16.msra.mxu0 0
  %141 = vmatpush.bf16.msra.mxu0 0
  %142 = vmatpush.bf16.msra.mxu0 0
  %143 = vmatpush.bf16.msra.mxu0 0
  %144 = vmatpush.bf16.msra.mxu0 0
  %145 = vmatpush.bf16.msra.mxu0 %v136
  %146 = vmatmul.bf16.gmra.mxu0 %v111
  %v147 = vpop.f32.mrf.mxu0
  %v148 = vadd.f32 0.0, %v147
  %v149 = vpop.f32.mrf.mxu0
  %v150 = vadd.f32 0.0, %v149
  %151 = vmatmul.bf16.gmra.mxu0 %v114
  %v152 = vpop.f32.mrf.mxu0
  %v153 = vadd.f32 0.0, %v152
  %v154 = vpop.f32.mrf.mxu0
  %v155 = vadd.f32 0.0, %v154
  %156 = vmatmul.bf16.gmra.mxu0 %v117
  %v157 = vpop.f32.mrf.mxu0
  %v158 = vadd.f32 0.0, %v157
  %v159 = vpop.f32.mrf.mxu0
  %v160 = vadd.f32 0.0, %v159
  %161 = vmatmul.bf16.gmra.mxu0 %v120
  %v162 = vpop.f32.mrf.mxu0
  %v163 = vadd.f32 0.0, %v162
  %v164 = vpop.f32.mrf.mxu0
  %v165 = vadd.f32 0.0, %v164
  %166 = vmatmul.bf16.gmra.mxu0 %v123
  %v167 = vpop.f32.mrf.mxu0
  %v168 = vadd.f32 0.0, %v167
  %v169 = vpop.f32.mrf.mxu0
  %v170 = vadd.f32 0.0, %v169
  %171 = vmatmul.bf16.gmra.mxu0 %v126
  %v172 = vpop.f32.mrf.mxu0
  %v173 = vadd.f32 0.0, %v172
  %v174 = vpop.f32.mrf.mxu0
  %v175 = vadd.f32 0.0, %v174
  %176 = vmatmul.bf16.gmra.mxu0 %v129
  %v177 = vpop.f32.mrf.mxu0
  %v178 = vadd.f32 0.0, %v177
  %v179 = vpop.f32.mrf.mxu0
  %v180 = vadd.f32 0.0, %v179
  %181 = vmatmul.bf16.gmra.mxu0 %v132
  %v182 = vpop.f32.mrf.mxu0
  %v183 = vadd.f32 0.0, %v182
  %v184 = vpop.f32.mrf.mxu0
  %v185 = vadd.f32 0.0, %v184
  %186 = vdwg.mxu0
  %v187 = vadd.f32 %v36, %v148
  %v188 = vadd.f32 %v37, %v150
  %v189 = vadd.f32 %v38, %v153
  %v190 = vadd.f32 %v39, %v155
  %v191 = vadd.f32 %v40, %v158
  %v192 = vadd.f32 %v41, %v160
  %v193 = vadd.f32 %v42, %v163
  %v194 = vadd.f32 %v43, %v165
  %v195 = vadd.f32 %v44, %v168
  %v196 = vadd.f32 %v45, %v170
  %v197 = vadd.f32 %v46, %v173
  %v198 = vadd.f32 %v47, %v175
  %v199 = vadd.f32 %v48, %v178
  %v200 = vadd.f32 %v49, %v180
  %v201 = vadd.f32 %v50, %v183
  %v202 = vadd.f32 %v51, %v185
  %vm203 = vcmask 261120
  %204 = vst.msk [vmem:[#allocation2] sm:$0xff] %vm203, %v187
  %205 = vst.msk [vmem:[#allocation2 + $0x8] sm:$0xff] %vm203, %v188
  %206 = vst.msk [vmem:[#allocation2 + $0x10] sm:$0xff] %vm203, %v189
  %207 = vst.msk [vmem:[#allocation2 + $0x18] sm:$0xff] %vm203, %v190
  %208 = vst.msk [vmem:[#allocation2 + $0x20] sm:$0xff] %vm203, %v191
  %209 = vst.msk [vmem:[#allocation2 + $0x28] sm:$0xff] %vm203, %v192
  %210 = vst.msk [vmem:[#allocation2 + $0x30] sm:$0xff] %vm203, %v193
  %211 = vst.msk [vmem:[#allocation2 + $0x38] sm:$0xff] %vm203, %v194
  %212 = vst.msk [vmem:[#allocation2 + $0x40] sm:$0xff] %vm203, %v195
  %213 = vst.msk [vmem:[#allocation2 + $0x48] sm:$0xff] %vm203, %v196
  %214 = vst.msk [vmem:[#allocation2 + $0x50] sm:$0xff] %vm203, %v197
  %215 = vst.msk [vmem:[#allocation2 + $0x58] sm:$0xff] %vm203, %v198
  %216 = vst.msk [vmem:[#allocation2 + $0x60] sm:$0xff] %vm203, %v199
  %217 = vst.msk [vmem:[#allocation2 + $0x68] sm:$0xff] %vm203, %v200
  %218 = vst.msk [vmem:[#allocation2 + $0x70] sm:$0xff] %vm203, %v201
  %219 = vst.msk [vmem:[#allocation2 + $0x78] sm:$0xff] %vm203, %v202
  // Predicated region
  $region18: #{tpu_custom_call.1} parent=0 // pred_check
    %p220 = pneg %p15
  $region19: #{tpu_custom_call.1} parent=0 // pred_check_branch
    %222 = sbr.rel (%p220) target = $region21
  $region20: #{tpu_custom_call.1} parent=0 // pred_region
    %v223 = vld [vmem:[#allocation2] sm:$0xff]
    %v224 = vld [vmem:[#allocation2 + $0x8] sm:$0xff]
    %v225 = vld [vmem:[#allocation2 + $0x10] sm:$0xff]
    %v226 = vld [vmem:[#allocation2 + $0x18] sm:$0xff]
    %v227 = vld [vmem:[#allocation2 + $0x20] sm:$0xff]
    %v228 = vld [vmem:[#allocation2 + $0x28] sm:$0xff]
    %v229 = vld [vmem:[#allocation2 + $0x30] sm:$0xff]
    %v230 = vld [vmem:[#allocation2 + $0x38] sm:$0xff]
    %v231 = vld [vmem:[#allocation2 + $0x40] sm:$0xff]
    %v232 = vld [vmem:[#allocation2 + $0x48] sm:$0xff]
    %v233 = vld [vmem:[#allocation2 + $0x50] sm:$0xff]
    %v234 = vld [vmem:[#allocation2 + $0x58] sm:$0xff]
    %v235 = vld [vmem:[#allocation2 + $0x60] sm:$0xff]
    %v236 = vld [vmem:[#allocation2 + $0x68] sm:$0xff]
    %v237 = vld [vmem:[#allocation2 + $0x70] sm:$0xff]
    %v238 = vld [vmem:[#allocation2 + $0x78] sm:$0xff]
    %v239 = vld [vmem:[%s2] sm:$0x1]
    %v241 = vperm.slane %v239, 0
    %v243 = vadd.f32 %v223, %v241
    %v244 = vadd.f32 %v224, %v241
    %v245 = vadd.f32 %v225, %v241
    %v246 = vadd.f32 %v226, %v241
    %v247 = vadd.f32 %v227, %v241
    %v248 = vadd.f32 %v228, %v241
    %v249 = vadd.f32 %v229, %v241
    %v250 = vadd.f32 %v230, %v241
    %v251 = vadd.f32 %v231, %v241
    %v252 = vadd.f32 %v232, %v241
    %v253 = vadd.f32 %v233, %v241
    %v254 = vadd.f32 %v234, %v241
    %v255 = vadd.f32 %v235, %v241
    %v256 = vadd.f32 %v236, %v241
    %v257 = vadd.f32 %v237, %v241
    %v258 = vadd.f32 %v238, %v241
    %v259 = vmul.f32 %v243, 0.5
    %v260 = vmul.f32 %v244, 0.5
    %v261 = vmul.f32 %v245, 0.5
    %v262 = vmul.f32 %v246, 0.5
    %v263 = vmul.f32 %v247, 0.5
    %v264 = vmul.f32 %v248, 0.5
    %v265 = vmul.f32 %v249, 0.5
    %v266 = vmul.f32 %v250, 0.5
    %v267 = vmul.f32 %v251, 0.5
    %v268 = vmul.f32 %v252, 0.5
    %v269 = vmul.f32 %v253, 0.5
    %v270 = vmul.f32 %v254, 0.5
    %v271 = vmul.f32 %v255, 0.5
    %v272 = vmul.f32 %v256, 0.5
    %v273 = vmul.f32 %v257, 0.5
    %v274 = vmul.f32 %v258, 0.5
    %v275 = vmul.f32 %v243, 0.70710677
    %v276 = vmul.f32 %v244, 0.70710677
    %v277 = vmul.f32 %v245, 0.70710677
    %v278 = vmul.f32 %v246, 0.70710677
    %v279 = vmul.f32 %v247, 0.70710677
    %v280 = vmul.f32 %v248, 0.70710677
    %v281 = vmul.f32 %v249, 0.70710677
    %v282 = vmul.f32 %v250, 0.70710677
    %v283 = vmul.f32 %v251, 0.70710677
    %v284 = vmul.f32 %v252, 0.70710677
    %v285 = vmul.f32 %v253, 0.70710677
    %v286 = vmul.f32 %v254, 0.70710677
    %v287 = vmul.f32 %v255, 0.70710677
    %v288 = vmul.f32 %v256, 0.70710677
    %v289 = vmul.f32 %v257, 0.70710677
    %v290 = vmul.f32 %v258, 0.70710677
    %vm291 = vcmp.ge.f32.partialorder %v275, 0.0
    %vm292 = vcmp.ge.f32.partialorder %v276, 0.0
    %vm293 = vcmp.ge.f32.partialorder %v277, 0.0
    %vm294 = vcmp.ge.f32.partialorder %v278, 0.0
    %vm295 = vcmp.ge.f32.partialorder %v279, 0.0
    %vm296 = vcmp.ge.f32.partialorder %v280, 0.0
    %vm297 = vcmp.ge.f32.partialorder %v281, 0.0
    %vm298 = vcmp.ge.f32.partialorder %v282, 0.0
    %vm299 = vcmp.ge.f32.partialorder %v283, 0.0
    %vm300 = vcmp.ge.f32.partialorder %v284, 0.0
    %vm301 = vcmp.ge.f32.partialorder %v285, 0.0
    %vm302 = vcmp.ge.f32.partialorder %v286, 0.0
    %vm303 = vcmp.ge.f32.partialorder %v287, 0.0
    %vm304 = vcmp.ge.f32.partialorder %v288, 0.0
    %vm305 = vcmp.ge.f32.partialorder %v289, 0.0
    %vm306 = vcmp.ge.f32.partialorder %v290, 0.0
    %v307 = vsel %vm291, 1.0, -1.0
    %v308 = vsel %vm292, 1.0, -1.0
    %v309 = vsel %vm293, 1.0, -1.0
    %v310 = vsel %vm294, 1.0, -1.0
    %v311 = vsel %vm295, 1.0, -1.0
    %v312 = vsel %vm296, 1.0, -1.0
    %v313 = vsel %vm297, 1.0, -1.0
    %v314 = vsel %vm298, 1.0, -1.0
    %v315 = vsel %vm299, 1.0, -1.0
    %v316 = vsel %vm300, 1.0, -1.0
    %v317 = vsel %vm301, 1.0, -1.0
    %v318 = vsel %vm302, 1.0, -1.0
    %v319 = vsel %vm303, 1.0, -1.0
    %v320 = vsel %vm304, 1.0, -1.0
    %v321 = vsel %vm305, 1.0, -1.0
    %v322 = vsel %vm306, 1.0, -1.0
    %v323 = vand.u32 2147483647, %v275
    %v324 = vand.u32 2147483647, %v276
    %v325 = vand.u32 2147483647, %v277
    %v326 = vand.u32 2147483647, %v278
    %v327 = vand.u32 2147483647, %v279
    %v328 = vand.u32 2147483647, %v280
    %v329 = vand.u32 2147483647, %v281
    %v330 = vand.u32 2147483647, %v282
    %v331 = vand.u32 2147483647, %v283
    %v332 = vand.u32 2147483647, %v284
    %v333 = vand.u32 2147483647, %v285
    %v334 = vand.u32 2147483647, %v286
    %v335 = vand.u32 2147483647, %v287
    %v336 = vand.u32 2147483647, %v288
    %v337 = vand.u32 2147483647, %v289
    %v338 = vand.u32 2147483647, %v290
    %v339 = vmul.f32 %v323, 0.3275911
    %v340 = vmul.f32 %v324, 0.3275911
    %v341 = vmul.f32 %v325, 0.3275911
    %v342 = vmul.f32 %v326, 0.3275911
    %v343 = vmul.f32 %v327, 0.3275911
    %v344 = vmul.f32 %v328, 0.3275911
    %v345 = vmul.f32 %v329, 0.3275911
    %v346 = vmul.f32 %v330, 0.3275911
    %v347 = vmul.f32 %v331, 0.3275911
    %v348 = vmul.f32 %v332, 0.3275911
    %v349 = vmul.f32 %v333, 0.3275911
    %v350 = vmul.f32 %v334, 0.3275911
    %v351 = vmul.f32 %v335, 0.3275911
    %v352 = vmul.f32 %v336, 0.3275911
    %v353 = vmul.f32 %v337, 0.3275911
    %v354 = vmul.f32 %v338, 0.3275911
    %v355 = vadd.f32 %v339, 1.0
    %v356 = vadd.f32 %v340, 1.0
    %v357 = vadd.f32 %v341, 1.0
    %v358 = vadd.f32 %v342, 1.0
    %v359 = vadd.f32 %v343, 1.0
    %v360 = vadd.f32 %v344, 1.0
    %v361 = vadd.f32 %v345, 1.0
    %v362 = vadd.f32 %v346, 1.0
    %v363 = vadd.f32 %v347, 1.0
    %v364 = vadd.f32 %v348, 1.0
    %v365 = vadd.f32 %v349, 1.0
    %v366 = vadd.f32 %v350, 1.0
    %v367 = vadd.f32 %v351, 1.0
    %v368 = vadd.f32 %v352, 1.0
    %v369 = vadd.f32 %v353, 1.0
    %v370 = vadd.f32 %v354, 1.0
    %v371 = vrcp.pop %v355
    %v372 = vmul.f32 %v355, %v371
    %v373 = vsub.f32 1.0, %v372
    %v374 = vmul.f32 %v371, %v373
    %v375 = vadd.f32 %v371, %v374
    %vm376 = vweird.f32 %v355
    %vm377 = vweird.f32 %v371
    %vm378 = vmor %vm376, %vm377
    %v379 = vsel %vm378, %v371, %v375
    %v380 = vand.u32 2147483647, %v355
    %vm381 = vcmp.eq.f32.partialorder %v380, 8.507059e+37
    %v382 = vand.u32 %v355, 2147483648
    %v383 = vor.u32 1.1754944e-38, %v382
    %v384 = vsel %vm381, %v383, %v379
    %v385 = vmul.f32 1.0, %v384
    %v386 = vrcp.pop %v356
    %v387 = vmul.f32 %v356, %v386
    %v388 = vsub.f32 1.0, %v387
    %v389 = vmul.f32 %v386, %v388
    %v390 = vadd.f32 %v386, %v389
    %vm391 = vweird.f32 %v356
    %vm392 = vweird.f32 %v386
    %vm393 = vmor %vm391, %vm392
    %v394 = vsel %vm393, %v386, %v390
    %v395 = vand.u32 2147483647, %v356
    %vm396 = vcmp.eq.f32.partialorder %v395, 8.507059e+37
    %v397 = vand.u32 %v356, 2147483648
    %v398 = vor.u32 1.1754944e-38, %v397
    %v399 = vsel %vm396, %v398, %v394
    %v400 = vmul.f32 1.0, %v399
    %v401 = vrcp.pop %v357
    %v402 = vmul.f32 %v357, %v401
    %v403 = vsub.f32 1.0, %v402
    %v404 = vmul.f32 %v401, %v403
    %v405 = vadd.f32 %v401, %v404
    %vm406 = vweird.f32 %v357
    %vm407 = vweird.f32 %v401
    %vm408 = vmor %vm406, %vm407
    %v409 = vsel %vm408, %v401, %v405
    %v410 = vand.u32 2147483647, %v357
    %vm411 = vcmp.eq.f32.partialorder %v410, 8.507059e+37
    %v412 = vand.u32 %v357, 2147483648
    %v413 = vor.u32 1.1754944e-38, %v412
    %v414 = vsel %vm411, %v413, %v409
    %v415 = vmul.f32 1.0, %v414
    %v416 = vrcp.pop %v358
    %v417 = vmul.f32 %v358, %v416
    %v418 = vsub.f32 1.0, %v417
    %v419 = vmul.f32 %v416, %v418
    %v420 = vadd.f32 %v416, %v419
    %vm421 = vweird.f32 %v358
    %vm422 = vweird.f32 %v416
    %vm423 = vmor %vm421, %vm422
    %v424 = vsel %vm423, %v416, %v420
    %v425 = vand.u32 2147483647, %v358
    %vm426 = vcmp.eq.f32.partialorder %v425, 8.507059e+37
    %v427 = vand.u32 %v358, 2147483648
    %v428 = vor.u32 1.1754944e-38, %v427
    %v429 = vsel %vm426, %v428, %v424
    %v430 = vmul.f32 1.0, %v429
    %v431 = vrcp.pop %v359
    %v432 = vmul.f32 %v359, %v431
    %v433 = vsub.f32 1.0, %v432
    %v434 = vmul.f32 %v431, %v433
    %v435 = vadd.f32 %v431, %v434
    %vm436 = vweird.f32 %v359
    %vm437 = vweird.f32 %v431
    %vm438 = vmor %vm436, %vm437
    %v439 = vsel %vm438, %v431, %v435
    %v440 = vand.u32 2147483647, %v359
    %vm441 = vcmp.eq.f32.partialorder %v440, 8.507059e+37
    %v442 = vand.u32 %v359, 2147483648
    %v443 = vor.u32 1.1754944e-38, %v442
    %v444 = vsel %vm441, %v443, %v439
    %v445 = vmul.f32 1.0, %v444
    %v446 = vrcp.pop %v360
    %v447 = vmul.f32 %v360, %v446
    %v448 = vsub.f32 1.0, %v447
    %v449 = vmul.f32 %v446, %v448
    %v450 = vadd.f32 %v446, %v449
    %vm451 = vweird.f32 %v360
    %vm452 = vweird.f32 %v446
    %vm453 = vmor %vm451, %vm452
    %v454 = vsel %vm453, %v446, %v450
    %v455 = vand.u32 2147483647, %v360
    %vm456 = vcmp.eq.f32.partialorder %v455, 8.507059e+37
    %v457 = vand.u32 %v360, 2147483648
    %v458 = vor.u32 1.1754944e-38, %v457
    %v459 = vsel %vm456, %v458, %v454
    %v460 = vmul.f32 1.0, %v459
    %v461 = vrcp.pop %v361
    %v462 = vmul.f32 %v361, %v461
    %v463 = vsub.f32 1.0, %v462
    %v464 = vmul.f32 %v461, %v463
    %v465 = vadd.f32 %v461, %v464
    %vm466 = vweird.f32 %v361
    %vm467 = vweird.f32 %v461
    %vm468 = vmor %vm466, %vm467
    %v469 = vsel %vm468, %v461, %v465
    %v470 = vand.u32 2147483647, %v361
    %vm471 = vcmp.eq.f32.partialorder %v470, 8.507059e+37
    %v472 = vand.u32 %v361, 2147483648
    %v473 = vor.u32 1.1754944e-38, %v472
    %v474 = vsel %vm471, %v473, %v469
    %v475 = vmul.f32 1.0, %v474
    %v476 = vrcp.pop %v362
    %v477 = vmul.f32 %v362, %v476
    %v478 = vsub.f32 1.0, %v477
    %v479 = vmul.f32 %v476, %v478
    %v480 = vadd.f32 %v476, %v479
    %vm481 = vweird.f32 %v362
    %vm482 = vweird.f32 %v476
    %vm483 = vmor %vm481, %vm482
    %v484 = vsel %vm483, %v476, %v480
    %v485 = vand.u32 2147483647, %v362
    %vm486 = vcmp.eq.f32.partialorder %v485, 8.507059e+37
    %v487 = vand.u32 %v362, 2147483648
    %v488 = vor.u32 1.1754944e-38, %v487
    %v489 = vsel %vm486, %v488, %v484
    %v490 = vmul.f32 1.0, %v489
    %v491 = vrcp.pop %v363
    %v492 = vmul.f32 %v363, %v491
    %v493 = vsub.f32 1.0, %v492
    %v494 = vmul.f32 %v491, %v493
    %v495 = vadd.f32 %v491, %v494
    %vm496 = vweird.f32 %v363
    %vm497 = vweird.f32 %v491
    %vm498 = vmor %vm496, %vm497
    %v499 = vsel %vm498, %v491, %v495
    %v500 = vand.u32 2147483647, %v363
    %vm501 = vcmp.eq.f32.partialorder %v500, 8.507059e+37
    %v502 = vand.u32 %v363, 2147483648
    %v503 = vor.u32 1.1754944e-38, %v502
    %v504 = vsel %vm501, %v503, %v499
    %v505 = vmul.f32 1.0, %v504
    %v506 = vrcp.pop %v364
    %v507 = vmul.f32 %v364, %v506
    %v508 = vsub.f32 1.0, %v507
    %v509 = vmul.f32 %v506, %v508
    %v510 = vadd.f32 %v506, %v509
    %vm511 = vweird.f32 %v364
    %vm512 = vweird.f32 %v506
    %vm513 = vmor %vm511, %vm512
    %v514 = vsel %vm513, %v506, %v510
    %v515 = vand.u32 2147483647, %v364
    %vm516 = vcmp.eq.f32.partialorder %v515, 8.507059e+37
    %v517 = vand.u32 %v364, 2147483648
    %v518 = vor.u32 1.1754944e-38, %v517
    %v519 = vsel %vm516, %v518, %v514
    %v520 = vmul.f32 1.0, %v519
    %v521 = vrcp.pop %v365
    %v522 = vmul.f32 %v365, %v521
    %v523 = vsub.f32 1.0, %v522
    %v524 = vmul.f32 %v521, %v523
    %v525 = vadd.f32 %v521, %v524
    %vm526 = vweird.f32 %v365
    %vm527 = vweird.f32 %v521
    %vm528 = vmor %vm526, %vm527
    %v529 = vsel %vm528, %v521, %v525
    %v530 = vand.u32 2147483647, %v365
    %vm531 = vcmp.eq.f32.partialorder %v530, 8.507059e+37
    %v532 = vand.u32 %v365, 2147483648
    %v533 = vor.u32 1.1754944e-38, %v532
    %v534 = vsel %vm531, %v533, %v529
    %v535 = vmul.f32 1.0, %v534
    %v536 = vrcp.pop %v366
    %v537 = vmul.f32 %v366, %v536
    %v538 = vsub.f32 1.0, %v537
    %v539 = vmul.f32 %v536, %v538
    %v540 = vadd.f32 %v536, %v539
    %vm541 = vweird.f32 %v366
    %vm542 = vweird.f32 %v536
    %vm543 = vmor %vm541, %vm542
    %v544 = vsel %vm543, %v536, %v540
    %v545 = vand.u32 2147483647, %v366
    %vm546 = vcmp.eq.f32.partialorder %v545, 8.507059e+37
    %v547 = vand.u32 %v366, 2147483648
    %v548 = vor.u32 1.1754944e-38, %v547
    %v549 = vsel %vm546, %v548, %v544
    %v550 = vmul.f32 1.0, %v549
    %v551 = vrcp.pop %v367
    %v552 = vmul.f32 %v367, %v551
    %v553 = vsub.f32 1.0, %v552
    %v554 = vmul.f32 %v551, %v553
    %v555 = vadd.f32 %v551, %v554
    %vm556 = vweird.f32 %v367
    %vm557 = vweird.f32 %v551
    %vm558 = vmor %vm556, %vm557
    %v559 = vsel %vm558, %v551, %v555
    %v560 = vand.u32 2147483647, %v367
    %vm561 = vcmp.eq.f32.partialorder %v560, 8.507059e+37
    %v562 = vand.u32 %v367, 2147483648
    %v563 = vor.u32 1.1754944e-38, %v562
    %v564 = vsel %vm561, %v563, %v559
    %v565 = vmul.f32 1.0, %v564
    %v566 = vrcp.pop %v368
    %v567 = vmul.f32 %v368, %v566
    %v568 = vsub.f32 1.0, %v567
    %v569 = vmul.f32 %v566, %v568
    %v570 = vadd.f32 %v566, %v569
    %vm571 = vweird.f32 %v368
    %vm572 = vweird.f32 %v566
    %vm573 = vmor %vm571, %vm572
    %v574 = vsel %vm573, %v566, %v570
    %v575 = vand.u32 2147483647, %v368
    %vm576 = vcmp.eq.f32.partialorder %v575, 8.507059e+37
    %v577 = vand.u32 %v368, 2147483648
    %v578 = vor.u32 1.1754944e-38, %v577
    %v579 = vsel %vm576, %v578, %v574
    %v580 = vmul.f32 1.0, %v579
    %v581 = vrcp.pop %v369
    %v582 = vmul.f32 %v369, %v581
    %v583 = vsub.f32 1.0, %v582
    %v584 = vmul.f32 %v581, %v583
    %v585 = vadd.f32 %v581, %v584
    %vm586 = vweird.f32 %v369
    %vm587 = vweird.f32 %v581
    %vm588 = vmor %vm586, %vm587
    %v589 = vsel %vm588, %v581, %v585
    %v590 = vand.u32 2147483647, %v369
    %vm591 = vcmp.eq.f32.partialorder %v590, 8.507059e+37
    %v592 = vand.u32 %v369, 2147483648
    %v593 = vor.u32 1.1754944e-38, %v592
    %v594 = vsel %vm591, %v593, %v589
    %v595 = vmul.f32 1.0, %v594
    %v596 = vrcp.pop %v370
    %v597 = vmul.f32 %v370, %v596
    %v598 = vsub.f32 1.0, %v597
    %v599 = vmul.f32 %v596, %v598
    %v600 = vadd.f32 %v596, %v599
    %vm601 = vweird.f32 %v370
    %vm602 = vweird.f32 %v596
    %vm603 = vmor %vm601, %vm602
    %v604 = vsel %vm603, %v596, %v600
    %v605 = vand.u32 2147483647, %v370
    %vm606 = vcmp.eq.f32.partialorder %v605, 8.507059e+37
    %v607 = vand.u32 %v370, 2147483648
    %v608 = vor.u32 1.1754944e-38, %v607
    %v609 = vsel %vm606, %v608, %v604
    %v610 = vmul.f32 1.0, %v609
    %v611 = vmul.f32 %v385, 1.0614054
    %v612 = vmul.f32 %v400, 1.0614054
    %v613 = vmul.f32 %v415, 1.0614054
    %v614 = vmul.f32 %v430, 1.0614054
    %v615 = vmul.f32 %v445, 1.0614054
    %v616 = vmul.f32 %v460, 1.0614054
    %v617 = vmul.f32 %v475, 1.0614054
    %v618 = vmul.f32 %v490, 1.0614054
    %v619 = vmul.f32 %v505, 1.0614054
    %v620 = vmul.f32 %v520, 1.0614054
    %v621 = vmul.f32 %v535, 1.0614054
    %v622 = vmul.f32 %v550, 1.0614054
    %v623 = vmul.f32 %v565, 1.0614054
    %v624 = vmul.f32 %v580, 1.0614054
    %v625 = vmul.f32 %v595, 1.0614054
    %v626 = vmul.f32 %v610, 1.0614054
    %v627 = vadd.f32 %v611, -1.4531521
    %v628 = vadd.f32 %v612, -1.4531521
    %v629 = vadd.f32 %v613, -1.4531521
    %v630 = vadd.f32 %v614, -1.4531521
    %v631 = vadd.f32 %v615, -1.4531521
    %v632 = vadd.f32 %v616, -1.4531521
    %v633 = vadd.f32 %v617, -1.4531521
    %v634 = vadd.f32 %v618, -1.4531521
    %v635 = vadd.f32 %v619, -1.4531521
    %v636 = vadd.f32 %v620, -1.4531521
    %v637 = vadd.f32 %v621, -1.4531521
    %v638 = vadd.f32 %v622, -1.4531521
    %v639 = vadd.f32 %v623, -1.4531521
    %v640 = vadd.f32 %v624, -1.4531521
    %v641 = vadd.f32 %v625, -1.4531521
    %v642 = vadd.f32 %v626, -1.4531521
    %v643 = vmul.f32 %v627, %v385
    %v644 = vmul.f32 %v628, %v400
    %v645 = vmul.f32 %v629, %v415
    %v646 = vmul.f32 %v630, %v430
    %v647 = vmul.f32 %v631, %v445
    %v648 = vmul.f32 %v632, %v460
    %v649 = vmul.f32 %v633, %v475
    %v650 = vmul.f32 %v634, %v490
    %v651 = vmul.f32 %v635, %v505
    %v652 = vmul.f32 %v636, %v520
    %v653 = vmul.f32 %v637, %v535
    %v654 = vmul.f32 %v638, %v550
    %v655 = vmul.f32 %v639, %v565
    %v656 = vmul.f32 %v640, %v580
    %v657 = vmul.f32 %v641, %v595
    %v658 = vmul.f32 %v642, %v610
    %v659 = vadd.f32 %v643, 1.4214138
    %v660 = vadd.f32 %v644, 1.4214138
    %v661 = vadd.f32 %v645, 1.4214138
    %v662 = vadd.f32 %v646, 1.4214138
    %v663 = vadd.f32 %v647, 1.4214138
    %v664 = vadd.f32 %v648, 1.4214138
    %v665 = vadd.f32 %v649, 1.4214138
    %v666 = vadd.f32 %v650, 1.4214138
    %v667 = vadd.f32 %v651, 1.4214138
    %v668 = vadd.f32 %v652, 1.4214138
    %v669 = vadd.f32 %v653, 1.4214138
    %v670 = vadd.f32 %v654, 1.4214138
    %v671 = vadd.f32 %v655, 1.4214138
    %v672 = vadd.f32 %v656, 1.4214138
    %v673 = vadd.f32 %v657, 1.4214138
    %v674 = vadd.f32 %v658, 1.4214138
    %v675 = vmul.f32 %v659, %v385
    %v676 = vmul.f32 %v660, %v400
    %v677 = vmul.f32 %v661, %v415
    %v678 = vmul.f32 %v662, %v430
    %v679 = vmul.f32 %v663, %v445
    %v680 = vmul.f32 %v664, %v460
    %v681 = vmul.f32 %v665, %v475
    %v682 = vmul.f32 %v666, %v490
    %v683 = vmul.f32 %v667, %v505
    %v684 = vmul.f32 %v668, %v520
    %v685 = vmul.f32 %v669, %v535
    %v686 = vmul.f32 %v670, %v550
    %v687 = vmul.f32 %v671, %v565
    %v688 = vmul.f32 %v672, %v580
    %v689 = vmul.f32 %v673, %v595
    %v690 = vmul.f32 %v674, %v610
    %v691 = vadd.f32 %v675, -0.28449672
    %v692 = vadd.f32 %v676, -0.28449672
    %v693 = vadd.f32 %v677, -0.28449672
    %v694 = vadd.f32 %v678, -0.28449672
    %v695 = vadd.f32 %v679, -0.28449672
    %v696 = vadd.f32 %v680, -0.28449672
    %v697 = vadd.f32 %v681, -0.28449672
    %v698 = vadd.f32 %v682, -0.28449672
    %v699 = vadd.f32 %v683, -0.28449672
    %v700 = vadd.f32 %v684, -0.28449672
    %v701 = vadd.f32 %v685, -0.28449672
    %v702 = vadd.f32 %v686, -0.28449672
    %v703 = vadd.f32 %v687, -0.28449672
    %v704 = vadd.f32 %v688, -0.28449672
    %v705 = vadd.f32 %v689, -0.28449672
    %v706 = vadd.f32 %v690, -0.28449672
    %v707 = vmul.f32 %v691, %v385
    %v708 = vmul.f32 %v692, %v400
    %v709 = vmul.f32 %v693, %v415
    %v710 = vmul.f32 %v694, %v430
    %v711 = vmul.f32 %v695, %v445
    %v712 = vmul.f32 %v696, %v460
    %v713 = vmul.f32 %v697, %v475
    %v714 = vmul.f32 %v698, %v490
    %v715 = vmul.f32 %v699, %v505
    %v716 = vmul.f32 %v700, %v520
    %v717 = vmul.f32 %v701, %v535
    %v718 = vmul.f32 %v702, %v550
    %v719 = vmul.f32 %v703, %v565
    %v720 = vmul.f32 %v704, %v580
    %v721 = vmul.f32 %v705, %v595
    %v722 = vmul.f32 %v706, %v610
    %v723 = vadd.f32 %v707, 0.2548296
    %v724 = vadd.f32 %v708, 0.2548296
    %v725 = vadd.f32 %v709, 0.2548296
    %v726 = vadd.f32 %v710, 0.2548296
    %v727 = vadd.f32 %v711, 0.2548296
    %v728 = vadd.f32 %v712, 0.2548296
    %v729 = vadd.f32 %v713, 0.2548296
    %v730 = vadd.f32 %v714, 0.2548296
    %v731 = vadd.f32 %v715, 0.2548296
    %v732 = vadd.f32 %v716, 0.2548296
    %v733 = vadd.f32 %v717, 0.2548296
    %v734 = vadd.f32 %v718, 0.2548296
    %v735 = vadd.f32 %v719, 0.2548296
    %v736 = vadd.f32 %v720, 0.2548296
    %v737 = vadd.f32 %v721, 0.2548296
    %v738 = vadd.f32 %v722, 0.2548296
    %v739 = vmul.f32 %v723, %v385
    %v740 = vmul.f32 %v724, %v400
    %v741 = vmul.f32 %v725, %v415
    %v742 = vmul.f32 %v726, %v430
    %v743 = vmul.f32 %v727, %v445
    %v744 = vmul.f32 %v728, %v460
    %v745 = vmul.f32 %v729, %v475
    %v746 = vmul.f32 %v730, %v490
    %v747 = vmul.f32 %v731, %v505
    %v748 = vmul.f32 %v732, %v520
    %v749 = vmul.f32 %v733, %v535
    %v750 = vmul.f32 %v734, %v550
    %v751 = vmul.f32 %v735, %v565
    %v752 = vmul.f32 %v736, %v580
    %v753 = vmul.f32 %v737, %v595
    %v754 = vmul.f32 %v738, %v610
    %v755 = vsub.f32 0.0, %v323
    %v756 = vsub.f32 0.0, %v324
    %v757 = vsub.f32 0.0, %v325
    %v758 = vsub.f32 0.0, %v326
    %v759 = vsub.f32 0.0, %v327
    %v760 = vsub.f32 0.0, %v328
    %v761 = vsub.f32 0.0, %v329
    %v762 = vsub.f32 0.0, %v330
    %v763 = vsub.f32 0.0, %v331
    %v764 = vsub.f32 0.0, %v332
    %v765 = vsub.f32 0.0, %v333
    %v766 = vsub.f32 0.0, %v334
    %v767 = vsub.f32 0.0, %v335
    %v768 = vsub.f32 0.0, %v336
    %v769 = vsub.f32 0.0, %v337
    %v770 = vsub.f32 0.0, %v338
    %v771 = vmul.f32 %v755, %v323
    %v772 = vmul.f32 %v756, %v324
    %v773 = vmul.f32 %v757, %v325
    %v774 = vmul.f32 %v758, %v326
    %v775 = vmul.f32 %v759, %v327
    %v776 = vmul.f32 %v760, %v328
    %v777 = vmul.f32 %v761, %v329
    %v778 = vmul.f32 %v762, %v330
    %v779 = vmul.f32 %v763, %v331
    %v780 = vmul.f32 %v764, %v332
    %v781 = vmul.f32 %v765, %v333
    %v782 = vmul.f32 %v766, %v334
    %v783 = vmul.f32 %v767, %v335
    %v784 = vmul.f32 %v768, %v336
    %v785 = vmul.f32 %v769, %v337
    %v786 = vmul.f32 %v770, %v338
    %v787 = vmul.f32 %v771, 1.442695
    %v788 = vpow.pop %v787
    %v789 = vmul.f32 %v772, 1.442695
    %v790 = vpow.pop %v789
    %v791 = vmul.f32 %v773, 1.442695
    %v792 = vpow.pop %v791
    %v793 = vmul.f32 %v774, 1.442695
    %v794 = vpow.pop %v793
    %v795 = vmul.f32 %v775, 1.442695
    %v796 = vpow.pop %v795
    %v797 = vmul.f32 %v776, 1.442695
    %v798 = vpow.pop %v797
    %v799 = vmul.f32 %v777, 1.442695
    %v800 = vpow.pop %v799
    %v801 = vmul.f32 %v778, 1.442695
    %v802 = vpow.pop %v801
    %v803 = vmul.f32 %v779, 1.442695
    %v804 = vpow.pop %v803
    %v805 = vmul.f32 %v780, 1.442695
    %v806 = vpow.pop %v805
    %v807 = vmul.f32 %v781, 1.442695
    %v808 = vpow.pop %v807
    %v809 = vmul.f32 %v782, 1.442695
    %v810 = vpow.pop %v809
    %v811 = vmul.f32 %v783, 1.442695
    %v812 = vpow.pop %v811
    %v813 = vmul.f32 %v784, 1.442695
    %v814 = vpow.pop %v813
    %v815 = vmul.f32 %v785, 1.442695
    %v816 = vpow.pop %v815
    %v817 = vmul.f32 %v786, 1.442695
    %v818 = vpow.pop %v817
    %v819 = vmul.f32 %v739, %v788
    %v820 = vmul.f32 %v740, %v790
    %v821 = vmul.f32 %v741, %v792
    %v822 = vmul.f32 %v742, %v794
    %v823 = vmul.f32 %v743, %v796
    %v824 = vmul.f32 %v744, %v798
    %v825 = vmul.f32 %v745, %v800
    %v826 = vmul.f32 %v746, %v802
    %v827 = vmul.f32 %v747, %v804
    %v828 = vmul.f32 %v748, %v806
    %v829 = vmul.f32 %v749, %v808
    %v830 = vmul.f32 %v750, %v810
    %v831 = vmul.f32 %v751, %v812
    %v832 = vmul.f32 %v752, %v814
    %v833 = vmul.f32 %v753, %v816
    %v834 = vmul.f32 %v754, %v818
    %v835 = vsub.f32 1.0, %v819
    %v836 = vsub.f32 1.0, %v820
    %v837 = vsub.f32 1.0, %v821
    %v838 = vsub.f32 1.0, %v822
    %v839 = vsub.f32 1.0, %v823
    %v840 = vsub.f32 1.0, %v824
    %v841 = vsub.f32 1.0, %v825
    %v842 = vsub.f32 1.0, %v826
    %v843 = vsub.f32 1.0, %v827
    %v844 = vsub.f32 1.0, %v828
    %v845 = vsub.f32 1.0, %v829
    %v846 = vsub.f32 1.0, %v830
    %v847 = vsub.f32 1.0, %v831
    %v848 = vsub.f32 1.0, %v832
    %v849 = vsub.f32 1.0, %v833
    %v850 = vsub.f32 1.0, %v834
    %v851 = vmul.f32 %v307, %v835
    %v852 = vmul.f32 %v308, %v836
    %v853 = vmul.f32 %v309, %v837
    %v854 = vmul.f32 %v310, %v838
    %v855 = vmul.f32 %v311, %v839
    %v856 = vmul.f32 %v312, %v840
    %v857 = vmul.f32 %v313, %v841
    %v858 = vmul.f32 %v314, %v842
    %v859 = vmul.f32 %v315, %v843
    %v860 = vmul.f32 %v316, %v844
    %v861 = vmul.f32 %v317, %v845
    %v862 = vmul.f32 %v318, %v846
    %v863 = vmul.f32 %v319, %v847
    %v864 = vmul.f32 %v320, %v848
    %v865 = vmul.f32 %v321, %v849
    %v866 = vmul.f32 %v322, %v850
    %v867 = vadd.f32 %v851, 1.0
    %v868 = vadd.f32 %v852, 1.0
    %v869 = vadd.f32 %v853, 1.0
    %v870 = vadd.f32 %v854, 1.0
    %v871 = vadd.f32 %v855, 1.0
    %v872 = vadd.f32 %v856, 1.0
    %v873 = vadd.f32 %v857, 1.0
    %v874 = vadd.f32 %v858, 1.0
    %v875 = vadd.f32 %v859, 1.0
    %v876 = vadd.f32 %v860, 1.0
    %v877 = vadd.f32 %v861, 1.0
    %v878 = vadd.f32 %v862, 1.0
    %v879 = vadd.f32 %v863, 1.0
    %v880 = vadd.f32 %v864, 1.0
    %v881 = vadd.f32 %v865, 1.0
    %v882 = vadd.f32 %v866, 1.0
    %v883 = vmul.f32 %v259, %v867
    %v884 = vmul.f32 %v260, %v868
    %v885 = vmul.f32 %v261, %v869
    %v886 = vmul.f32 %v262, %v870
    %v887 = vmul.f32 %v263, %v871
    %v888 = vmul.f32 %v264, %v872
    %v889 = vmul.f32 %v265, %v873
    %v890 = vmul.f32 %v266, %v874
    %v891 = vmul.f32 %v267, %v875
    %v892 = vmul.f32 %v268, %v876
    %v893 = vmul.f32 %v269, %v877
    %v894 = vmul.f32 %v270, %v878
    %v895 = vmul.f32 %v271, %v879
    %v896 = vmul.f32 %v272, %v880
    %v897 = vmul.f32 %v273, %v881
    %v898 = vmul.f32 %v274, %v882
    %v899 = vpack.c.bf16 %v883, %v883
    %v900 = vpack.c.bf16 %v884, %v884
    %v901 = vpack.c.bf16 %v885, %v885
    %v902 = vpack.c.bf16 %v886, %v886
    %v903 = vpack.c.bf16 %v887, %v887
    %v904 = vpack.c.bf16 %v888, %v888
    %v905 = vpack.c.bf16 %v889, %v889
    %v906 = vpack.c.bf16 %v890, %v890
    %v907 = vpack.c.bf16 %v891, %v891
    %v908 = vpack.c.bf16 %v892, %v892
    %v909 = vpack.c.bf16 %v893, %v893
    %v910 = vpack.c.bf16 %v894, %v894
    %v911 = vpack.c.bf16 %v895, %v895
    %v912 = vpack.c.bf16 %v896, %v896
    %v913 = vpack.c.bf16 %v897, %v897
    %v914 = vpack.c.bf16 %v898, %v898
    %vm915 = vcmask 257024
    %916 = vst.msk [vmem:[%s3] sm:$0xf] %vm915, %v899
    %917 = vst.msk [vmem:[%s3 + $0x4] sm:$0xf] %vm915, %v900
    %918 = vst.msk [vmem:[%s3 + $0x8] sm:$0xf] %vm915, %v901
    %919 = vst.msk [vmem:[%s3 + $0xc] sm:$0xf] %vm915, %v902
    %920 = vst.msk [vmem:[%s3 + $0x10] sm:$0xf] %vm915, %v903
    %921 = vst.msk [vmem:[%s3 + $0x14] sm:$0xf] %vm915, %v904
    %922 = vst.msk [vmem:[%s3 + $0x18] sm:$0xf] %vm915, %v905
    %923 = vst.msk [vmem:[%s3 + $0x1c] sm:$0xf] %vm915, %v906
    %924 = vst.msk [vmem:[%s3 + $0x20] sm:$0xf] %vm915, %v907
    %925 = vst.msk [vmem:[%s3 + $0x24] sm:$0xf] %vm915, %v908
    %926 = vst.msk [vmem:[%s3 + $0x28] sm:$0xf] %vm915, %v909
    %927 = vst.msk [vmem:[%s3 + $0x2c] sm:$0xf] %vm915, %v910
    %928 = vst.msk [vmem:[%s3 + $0x30] sm:$0xf] %vm915, %v911
    %929 = vst.msk [vmem:[%s3 + $0x34] sm:$0xf] %vm915, %v912
    %930 = vst.msk [vmem:[%s3 + $0x38] sm:$0xf] %vm915, %v913
    %931 = vst.msk [vmem:[%s3 + $0x3c] sm:$0xf] %vm915, %v914
  $region21: #{tpu_custom_call.1} parent=0 // pred_fallthru
    _
  // Predicated region
  $region22: #{tpu_custom_call.1} parent=0 // pred_check
    _
  $region23: #{tpu_custom_call.1} parent=0 // pred_check_branch
    %933 = sbr.rel (0) target = $region25
  $region24: #{tpu_custom_call.1} parent=0 // pred_region
    _
  $region25: #{tpu_custom_call.1} parent=0 // pred_fallthru
    _
  // Predicated region
  $region26: #{tpu_custom_call.1} parent=0 // pred_check
    _
  $region27: #{tpu_custom_call.1} parent=0 // pred_check_branch
    %935 = sbr.rel (0) target = $region29
  $region28: #{tpu_custom_call.1} parent=0 // pred_region
    _
  $region29: #{tpu_custom_call.1} parent=0 // pred_fallthru
    _

</llo_original>
